<compile_context>
chip_gen: v7x
topology: tpu7x:2x2x1
jax: 0.10.0
libtpu: 0.0.40
codegen_flags: <defaults>
</compile_context>

<pallas_src>
import jax
import jax.numpy as jnp
from jax import lax
from jax.experimental import pallas as pl
from jax.experimental.pallas import tpu as pltpu

_F32_BYTES = 4


def _self_attn_kernel(x_ref, w1_ref, w2_ref, out_ref):
    # x_ref:   (Bt, S, D)   batch tile of inputs
    # w1_ref:  (D, da)      ws1.weight.T
    # w2_ref:  (r, da)      ws2.weight (untransposed)
    # out_ref: (Bt, r, S)   or lane-dense (Bt, 1, r*S)
    bt, s, d = x_ref.shape
    da = w1_ref.shape[1]
    r = w2_ref.shape[0]

    # ---- ws1 over the whole batch tile: one MXU op + one tanh slab (f32) ----
    x2d = x_ref[...].reshape(bt * s, d)              # layout-free when S % 8 == 0
    h1 = jnp.tanh(jnp.dot(x2d, w1_ref[...], preferred_element_type=jnp.float32))
    h1 = h1.astype(w2_ref.dtype).reshape(bt, s, da)  # (Bt, S, da); no-op cast for f32

    # ---- ws2: batched dot giving logits directly in (Bt, r, S); no transpose ----
    w2b = jnp.broadcast_to(w2_ref[...][None, :, :], (bt, r, da))
    logits = lax.dot_general(
        w2b, h1,
        dimension_numbers=(((2,), (2,)), ((0,), (0,))),
        preferred_element_type=jnp.float32)          # (Bt, r, S)

    # ---- one batched softmax over the sequence (lane) axis ----
    m = jnp.max(logits, axis=-1, keepdims=True)      # (Bt, r, 1)
    e = jnp.exp(logits - m)                          # (Bt, r, S)
    denom = jnp.sum(e, axis=-1, keepdims=True)       # (Bt, r, 1)
    attn = e * pl.reciprocal(denom, approx=True)     # (Bt, r, S)

    # ---- single store (lane-dense slab when the wrapper requested it) ----
    out_ref[...] = attn.reshape(out_ref.shape).astype(out_ref.dtype)


def _tpu_vmem_and_cores():
    """(vmem_capacity_bytes, tensorcores_per_chip) with conservative fallbacks."""
    vmem = 64 * 1024 * 1024           # v7x per-TensorCore VMEM: smallest current gen
    cores = 1
    try:
        info = pltpu.get_tpu_info()
        vmem = int(getattr(info, "vmem_capacity_bytes", vmem))
    except Exception:
        pass
    try:
        kind = jax.devices()[0].device_kind.lower()
        if "v7" in kind or "v4" in kind:  # 2 TensorCores per device
            cores = 2
    except Exception:
        pass
    return vmem, cores


def _step_vmem_bytes(bt, S, D, da, r, itemsize):
    """Approximate per-grid-step VMEM footprint for batch tile `bt`."""
    weights = (D * da + r * da) * itemsize                    # resident weights
    x_in = 2 * bt * S * D * itemsize                          # double-buffered input
    out = 2 * bt * r * S * itemsize                           # double-buffered output
    tmp = bt * S * da * _F32_BYTES + 2 * bt * r * S * _F32_BYTES  # f32 h1 + logits/attn
    return weights + x_in + out + tmp


def _pick_batch_tile(B, S, D, da, r, itemsize, vmem_budget, multi_core):
    """Largest divisor of B whose per-step footprint fits the VMEM budget.

    On multi-TensorCore chips prefer an even (else >= 2) grid-step count so the
    'parallel' batch axis splits across both cores; on single-TC chips just
    take the biggest tile that fits (biggest tile = best HBM-roofline fraction).
    """
    divisors = [d for d in range(1, B + 1) if B % d == 0]
    fitting = [d for d in divisors
               if _step_vmem_bytes(d, S, D, da, r, itemsize) <= vmem_budget]
    if not fitting:
        # TODO(synk): if even bt=1 overflows VMEM, tile S with a two-pass softmax.
        fitting = [1]
    if multi_core:
        even = [d for d in fitting if (B // d) % 2 == 0]
        if even:
            return max(even)
        multi = [d for d in fitting if (B // d) >= 2]
        if multi:
            return max(multi)
    return max(fitting)


def self_attention(h, w1, w2):
    """h: (B, S, D); w1 = ws1.weight: (da, D); w2 = ws2.weight: (r, da).

    Returns attn_mat of shape (B, r, S), matching the PyTorch forward
    (softmax over the sequence dim, then permute(0, 2, 1)).
    """
    B, S, D = h.shape
    da = w1.shape[0]
    r = w2.shape[0]
    itemsize = jnp.dtype(h.dtype).itemsize

    vmem_cap, n_cores = _tpu_vmem_and_cores()
    bt = _pick_batch_tile(B, S, D, da, r, itemsize,
                          vmem_budget=int(0.6 * vmem_cap),
                          multi_core=(n_cores > 1))
    steps = B // bt

    needed = _step_vmem_bytes(bt, S, D, da, r, itemsize)
    vmem_limit = int(min(0.9 * vmem_cap, max(2 * needed, 32 * 1024 * 1024)))

    # Lane-dense output slab when S would otherwise force masked partial stores.
    lane_dense = (S % 128) != 0
    if lane_dense:
        out_shape = jax.ShapeDtypeStruct((B, 1, r * S), h.dtype)
        out_spec = pl.BlockSpec((bt, 1, r * S), lambda i: (i, 0, 0))
    else:
        out_shape = jax.ShapeDtypeStruct((B, r, S), h.dtype)
        out_spec = pl.BlockSpec((bt, r, S), lambda i: (i, 0, 0))

    w1_t = w1.T  # (D, da) -- host-side, once

    out = pl.pallas_call(
        _self_attn_kernel,
        out_shape=out_shape,
        grid_spec=pltpu.PrefetchScalarGridSpec(
            num_scalar_prefetch=0,
            grid=(steps,),
            in_specs=[
                pl.BlockSpec((bt, S, D), lambda i: (i, 0, 0)),  # batch-tiled input
                pl.BlockSpec((D, da), lambda i: (0, 0)),        # resident weight
                pl.BlockSpec((r, da), lambda i: (0, 0)),        # resident weight
            ],
            out_specs=out_spec,
        ),
        compiler_params=pltpu.CompilerParams(
            dimension_semantics=("parallel",),
            vmem_limit_bytes=vmem_limit,
        ),
    )(h, w1_t, w2)

    if lane_dense:
        out = out.reshape(B, r, S)   # free layout plumbing in the wrapper
    return out


def _reference(h, w1, w2):
    # Pure-JAX reference of the PyTorch forward.
    logits = jnp.einsum("bsa,ra->bsr",
                        jnp.tanh(jnp.einsum("bsd,ad->bsa", h, w1)), w2)
    attn = jax.nn.softmax(logits, axis=1)
    return jnp.transpose(attn, (0, 2, 1))


if __name__ == "__main__":
    # Small shapes consistent with the module: (batch, seq, input_dim).
    B, S, D = 4, 8, 32
    DA, R = 16, 4

    key = jax.random.PRNGKey(0)
    k_h, k_w1, k_w2 = jax.random.split(key, 3)

    h = jax.random.normal(k_h, (B, S, D), dtype=jnp.float32)
    # PyTorch Linear weight shapes: (out_features, in_features).
    w1 = jax.random.normal(k_w1, (DA, D), dtype=jnp.float32) * 0.1  # ws1.weight
    w2 = jax.random.normal(k_w2, (R, DA), dtype=jnp.float32) * 0.1  # ws2.weight

    out = self_attention(h, w1, w2)
    out = jax.block_until_ready(out)

    ref = _reference(h, w1, w2)
    assert out.shape == (B, R, S)
    # Slightly loose tolerance: approx (EUP) reciprocal in the softmax denom.
    assert jnp.allclose(out, ref, atol=2e-3, rtol=2e-3), "mismatch vs reference"

    print("KERNEL_OK")
</pallas_src>

<mosaic_0001>
module attributes {stable_mosaic.version = 11 : i64} {
  func.func @_self_attn_kernel(%arg0: i32, %arg1: memref<4x8x32xf32, #tpu.memory_space<vmem>>, %arg2: memref<32x16xf32, #tpu.memory_space<vmem>>, %arg3: memref<4x16xf32, #tpu.memory_space<vmem>>, %arg4: memref<4x1x32xf32, #tpu.memory_space<vmem>>) attributes {dimension_semantics = [#tpu.dimension_semantics<parallel>], iteration_bounds = array<i64: 1>, scalar_prefetch = 0 : i64, scratch_operands = 0 : i64, tpu.core_type = #tpu.core_type<tc>, window_params = [{transform_indices = @transform_0, window_bounds = array<i64: 4, 8, 32>}, {pipeline_mode = #tpu.pipeline_mode<synchronous>, transform_indices = @transform_1, window_bounds = array<i64: 32, 16>}, {pipeline_mode = #tpu.pipeline_mode<synchronous>, transform_indices = @transform_2, window_bounds = array<i64: 4, 16>}, {transform_indices = @transform_3, window_bounds = array<i64: 4, 1, 32>}]} {
    %c0 = arith.constant 0 : index
    %c0_0 = arith.constant 0 : index
    %c0_1 = arith.constant 0 : index
    %0 = vector.load %arg1[%c0, %c0_0, %c0_1] : memref<4x8x32xf32, #tpu.memory_space<vmem>>, vector<4x8x32xf32>
    %1 = vector.shape_cast %0 : vector<4x8x32xf32> to vector<32x32xf32>
    %c0_2 = arith.constant 0 : index
    %c0_3 = arith.constant 0 : index
    %2 = vector.load %arg2[%c0_2, %c0_3] : memref<32x16xf32, #tpu.memory_space<vmem>>, vector<32x16xf32>
    %cst = arith.constant dense<0.000000e+00> : vector<32x16xf32>
    %3 = tpu.matmul %1, %2, %cst {dimension_numbers = #tpu.dot_dimension_numbers<[1], [0], [0], [1], [0, 0, 1, 1], [], []>} : vector<32x32xf32>, vector<32x16xf32>, vector<32x16xf32> -> vector<32x16xf32>
    %4 = math.tanh %3 : vector<32x16xf32>
    %5 = vector.shape_cast %4 : vector<32x16xf32> to vector<4x8x16xf32>
    %c0_4 = arith.constant 0 : index
    %c0_5 = arith.constant 0 : index
    %6 = vector.load %arg3[%c0_4, %c0_5] : memref<4x16xf32, #tpu.memory_space<vmem>>, vector<4x16xf32>
    %7 = vector.shape_cast %6 : vector<4x16xf32> to vector<1x4x16xf32>
    %8 = vector.shape_cast %7 : vector<1x4x16xf32> to vector<1x4x16xf32>
    %9 = vector.broadcast %8 : vector<1x4x16xf32> to vector<4x4x16xf32>
    %cst_6 = arith.constant dense<0.000000e+00> : vector<4x4x8xf32>
    %10 = tpu.matmul %9, %5, %cst_6 {dimension_numbers = #tpu.dot_dimension_numbers<[2], [2], [1], [1], [0, 0, 0, 1, 1, 1], [0], [0]>} : vector<4x4x16xf32>, vector<4x8x16xf32>, vector<4x4x8xf32> -> vector<4x4x8xf32>
    %cst_7 = arith.constant dense<0xFF800000> : vector<4x4xf32>
    %11 = vector.multi_reduction <maximumf>, %10, %cst_7 [2] : vector<4x4x8xf32> to vector<4x4xf32>
    %12 = vector.shape_cast %11 : vector<4x4xf32> to vector<4x4x1xf32>
    %13 = vector.broadcast %12 : vector<4x4x1xf32> to vector<4x4x8xf32>
    %14 = arith.subf %10, %13 : vector<4x4x8xf32>
    %15 = math.exp %14 : vector<4x4x8xf32>
    %cst_8 = arith.constant dense<0.000000e+00> : vector<4x4xf32>
    %16 = vector.multi_reduction <add>, %15, %cst_8 [2] : vector<4x4x8xf32> to vector<4x4xf32>
    %17 = vector.shape_cast %16 : vector<4x4xf32> to vector<4x4x1xf32>
    %18 = tpu.reciprocal %17 {approx = true} : vector<4x4x1xf32> -> vector<4x4x1xf32>
    %19 = vector.broadcast %18 : vector<4x4x1xf32> to vector<4x4x8xf32>
    %20 = arith.mulf %15, %19 : vector<4x4x8xf32>
    %21 = vector.shape_cast %20 : vector<4x4x8xf32> to vector<4x1x32xf32>
    %c0_9 = arith.constant 0 : index
    %c0_10 = arith.constant 0 : index
    %c0_11 = arith.constant 0 : index
    %22 = vector.load %arg4[%c0_9, %c0_10, %c0_11] : memref<4x1x32xf32, #tpu.memory_space<vmem>>, vector<4x1x32xf32>
    tpu.vector_store %arg4[%c0_9, %c0_10, %c0_11], %21 {strides = array<i32>} : memref<4x1x32xf32, #tpu.memory_space<vmem>>, vector<4x1x32xf32>,
    return
  }
  func.func @transform_0(%arg0: i32) -> (i32, i32, i32) {
    %c0_i32 = arith.constant 0 : i32
    %c0_i32_0 = arith.constant 0 : i32
    %c0_i32_1 = arith.constant 0 : i32
    return %arg0, %c0_i32, %c0_i32_0 : i32, i32, i32
  }
  func.func @transform_1(%arg0: i32) -> (i32, i32) {
    %c0_i32 = arith.constant 0 : i32
    %c0_i32_0 = arith.constant 0 : i32
    %c0_i32_1 = arith.constant 0 : i32
    return %c0_i32, %c0_i32_0 : i32, i32
  }
  func.func @transform_2(%arg0: i32) -> (i32, i32) {
    %c0_i32 = arith.constant 0 : i32
    %c0_i32_0 = arith.constant 0 : i32
    %c0_i32_1 = arith.constant 0 : i32
    return %c0_i32, %c0_i32_0 : i32, i32
  }
  func.func @transform_3(%arg0: i32) -> (i32, i32, i32) {
    %c0_i32 = arith.constant 0 : i32
    %c0_i32_0 = arith.constant 0 : i32
    %c0_i32_1 = arith.constant 0 : i32
    return %arg0, %c0_i32, %c0_i32_0 : i32, i32, i32
  }
}

</mosaic_0001>

<llo_original>
// kernel: tpu_custom_call.1
$region0: #{tpu_custom_call.1}
  #allocation0 [shape = 'u32[]', space=smem, size = 0x4, offset = 0x4, fixed_abs, tag = 'smem constant byte address 0x4 - core index']
  #allocation1 [shape = 'u32[144,128]{1,0:T(1,128)}', space=vmem, size = 0x12000, scoped, tag = 'internal scratch']
  %s0 = inlined_call_operand.vmem [shape: f32[4,8,32], index: 0, kind: input, shape index: {}]
  %s1 = inlined_call_operand.vmem [shape: f32[32,16], index: 1, kind: input, shape index: {}]
  %s2 = inlined_call_operand.vmem [shape: f32[4,16], index: 2, kind: input, shape index: {}]
  %s3 = inlined_call_operand.hbm [shape: f32[4,1,32], index: 3, kind: output, shape index: {}]
  %s4 = sld [smem:[#allocation0]]
  $region22: #{tpu_custom_call.1} parent=0
    _
  %s6 = ssub.s32 1, %s4
  %s7 = scalar_select 0, %s6, %s4
  $region1: #{tpu_custom_call.1} parent=0
    #allocation2 [shape = 'u8[2048]{0}', space=vmem, size = 0x800, scoped, tag = 'output window, operand 0, single buffered']
    #allocation3 [shape = 's32[1]{0}', space=sflag, size = 0x4, scoped, tag = 'scoped memory for tpu_custom_call.1']
    %8 = vsyncpa [#allocation3], 0
    // Predicated region
    $region2: #{tpu_custom_call.1} parent=1 // pred_check
      _
    $region3: #{tpu_custom_call.1} parent=1 // pred_check_branch
      %10 = sbr.rel (0) target = $region5
    $region4: #{tpu_custom_call.1} parent=1 // pred_region
      _
    $region5: #{tpu_custom_call.1} parent=1 // pred_fallthru
      _
    // Predicated region
    $region6: #{tpu_custom_call.1} parent=1 // pred_check
      _
    $region7: #{tpu_custom_call.1} parent=1 // pred_check_branch
      %12 = sbr.rel (0) target = $region9
    $region8: #{tpu_custom_call.1} parent=1 // pred_region
      _
    $region9: #{tpu_custom_call.1} parent=1 // pred_fallthru
      _
    // Predicated region
    $region10: #{tpu_custom_call.1} parent=1 // pred_check
      _
    $region11: #{tpu_custom_call.1} parent=1 // pred_check_branch
      %14 = sbr.rel (0) target = $region13
    $region12: #{tpu_custom_call.1} parent=1 // pred_region
      _
    $region13: #{tpu_custom_call.1} parent=1 // pred_fallthru
      _
    %v15 = vld [vmem:[%s0] sm:$0xff]
    %v16 = vld [vmem:[%s0 + $0x8] sm:$0xff]
    %v17 = vld [vmem:[%s0 + $0x10] sm:$0xff]
    %v18 = vld [vmem:[%s0 + $0x18] sm:$0xff]
    %v19 = vld [vmem:[%s1] sm:$0xff]
    %v20 = vld [vmem:[%s1 + $0x8] sm:$0xff]
    %v21 = vld [vmem:[%s1 + $0x10] sm:$0xff]
    %v22 = vld [vmem:[%s1 + $0x18] sm:$0xff]
    %vm23 = vcmask 261120
    %v25 = vsel %vm23, %v15, 0
    %v28 = vsel %vm23, %v16, 0
    %v31 = vsel %vm23, %v17, 0
    %v34 = vsel %vm23, %v18, 0
    %36 = vmatprep.subr.mxu0 0.0
    %37 = vmatpush1.msra.mxu0 %v19
    %38 = vmatprep.subr.mxu0 0.0
    %39 = vmatpush1.msra.mxu0 %v20
    %40 = vmatprep.subr.mxu0 0.0
    %41 = vmatpush1.msra.mxu0 %v21
    %42 = vmatprep.subr.mxu0 0.0
    %43 = vmatpush1.msra.mxu0 %v22
    %44 = vmatprep.subr.mxu0 0.0
    %45 = vmatpush1.msra.mxu0 0.0
    %46 = vmatprep.subr.mxu0 0.0
    %47 = vmatpush1.msra.mxu0 0.0
    %48 = vmatprep.subr.mxu0 0.0
    %49 = vmatpush1.msra.mxu0 0.0
    %50 = vmatprep.subr.mxu0 0.0
    %51 = vmatpush1.msra.mxu0 0.0
    %52 = vmatprep.subr.mxu0 0.0
    %53 = vmatpush1.msra.mxu0 0.0
    %54 = vmatprep.subr.mxu0 0.0
    %55 = vmatpush1.msra.mxu0 0.0
    %56 = vmatprep.subr.mxu0 0.0
    %57 = vmatpush1.msra.mxu0 0.0
    %58 = vmatprep.subr.mxu0 0.0
    %59 = vmatpush1.msra.mxu0 0.0
    %60 = vmatprep.subr.mxu0 0.0
    %61 = vmatpush1.msra.mxu0 0.0
    %62 = vmatprep.subr.mxu0 0.0
    %63 = vmatpush1.msra.mxu0 0.0
    %64 = vmatprep.subr.mxu0 0.0
    %65 = vmatpush1.msra.mxu0 0.0
    %66 = vmatprep.subr.mxu0 0.0
    %67 = vmatpush1.msra.mxu0 0.0
    %68 = vmatprep.subr.mxu0 0.0
    %69 = vmatpush1.msra.mxu0 0.0
    %70 = vmatprep.subr.mxu0 0.0
    %71 = vmatpush1.msra.mxu0 0.0
    %72 = vmatprep.subr.mxu0 0.0
    %73 = vmatpush1.msra.mxu0 0.0
    %74 = vmatprep.subr.mxu0 0.0
    %75 = vmatpush1.msra.mxu0 0.0
    %76 = vmatprep.subr.mxu0 0.0
    %77 = vmatpush1.msra.mxu0 0.0
    %78 = vmatprep.subr.mxu0 0.0
    %79 = vmatpush1.msra.mxu0 0.0
    %80 = vmatprep.subr.mxu0 0.0
    %81 = vmatpush1.msra.mxu0 0.0
    %82 = vmatprep.subr.mxu0 0.0
    %83 = vmatpush1.msra.mxu0 0.0
    %84 = vmatprep.subr.mxu0 0.0
    %85 = vmatpush1.msra.mxu0 0.0
    %86 = vmatprep.subr.mxu0 0.0
    %87 = vmatpush1.msra.mxu0 0.0
    %88 = vmatprep.subr.mxu0 0.0
    %89 = vmatpush1.msra.mxu0 0.0
    %90 = vmatprep.subr.mxu0 0.0
    %91 = vmatpush1.msra.mxu0 0.0
    %92 = vmatprep.subr.mxu0 0.0
    %93 = vmatpush1.msra.mxu0 0.0
    %94 = vmatprep.subr.mxu0 0.0
    %95 = vmatpush1.msra.mxu0 0.0
    %96 = vmatprep.subr.mxu0 0.0
    %97 = vmatpush1.msra.mxu0 0.0
    %98 = vmatprep.subr.mxu0 0.0
    %99 = vmatpush1.msra.mxu0 0.0
    %100 = vmatprep.mubr.f32.mxu0 0.0
    %101 = vmatmul.mubr.f32.gmra.mrb[0].mxu0 %v25
    %v102 = vpop.f32.mrb[0].mxu0
    %v103 = vadd.f32 0.0, %v102
    %v104 = vpop.f32.mrb[0].mxu0
    %105 = vmatprep.mubr.f32.mxu0 0.0
    %106 = vmatmul.mubr.f32.gmra.mrb[0].mxu0 %v28
    %v107 = vpop.f32.mrb[0].mxu0
    %v108 = vadd.f32 0.0, %v107
    %v109 = vpop.f32.mrb[0].mxu0
    %110 = vmatprep.mubr.f32.mxu0 0.0
    %111 = vmatmul.mubr.f32.gmra.mrb[0].mxu0 %v31
    %v112 = vpop.f32.mrb[0].mxu0
    %v113 = vadd.f32 0.0, %v112
    %v114 = vpop.f32.mrb[0].mxu0
    %115 = vmatprep.mubr.f32.mxu0 0.0
    %116 = vmatmul.mubr.f32.gmra.mrb[0].mxu0 %v34
    %v117 = vpop.f32.mrb[0].mxu0
    %v118 = vadd.f32 0.0, %v117
    %v119 = vpop.f32.mrb[0].mxu0
    %120 = vdwg.mxu0
    %v121 = vtanh.pop %v103
    %v122 = vtanh.pop %v108
    %v123 = vtanh.pop %v113
    %v124 = vtanh.pop %v118
    %v125 = vld [vmem:[%s2] sm:$0xf]
    %vm126 = vcmask 130048
    %v128 = vsel %vm126, %v125, 0
    %v131 = vsel %vm126, %v121, 0
    %133 = vmatprep.subr.mxu0 0.0
    %134 = vmatpush1.xpose.msra.mxu0 %v131
    %135 = vmatprep.subr.mxu0 0.0
    %136 = vmatpush1.xpose.msra.mxu0 0.0
    %137 = vmatprep.subr.mxu0 0.0
    %138 = vmatpush1.xpose.msra.mxu0 0.0
    %139 = vmatprep.subr.mxu0 0.0
    %140 = vmatpush1.xpose.msra.mxu0 0.0
    %141 = vmatprep.subr.mxu0 0.0
    %142 = vmatpush1.xpose.msra.mxu0 0.0
    %143 = vmatprep.subr.mxu0 0.0
    %144 = vmatpush1.xpose.msra.mxu0 0.0
    %145 = vmatprep.subr.mxu0 0.0
    %146 = vmatpush1.xpose.msra.mxu0 0.0
    %147 = vmatprep.subr.mxu0 0.0
    %148 = vmatpush1.xpose.msra.mxu0 0.0
    %149 = vmatprep.subr.mxu0 0.0
    %150 = vmatpush1.xpose.msra.mxu0 0.0
    %151 = vmatprep.subr.mxu0 0.0
    %152 = vmatpush1.xpose.msra.mxu0 0.0
    %153 = vmatprep.subr.mxu0 0.0
    %154 = vmatpush1.xpose.msra.mxu0 0.0
    %155 = vmatprep.subr.mxu0 0.0
    %156 = vmatpush1.xpose.msra.mxu0 0.0
    %157 = vmatprep.subr.mxu0 0.0
    %158 = vmatpush1.xpose.msra.mxu0 0.0
    %159 = vmatprep.subr.mxu0 0.0
    %160 = vmatpush1.xpose.msra.mxu0 0.0
    %161 = vmatprep.subr.mxu0 0.0
    %162 = vmatpush1.xpose.msra.mxu0 0.0
    %163 = vmatprep.subr.mxu0 0.0
    %164 = vmatpush1.xpose.msra.mxu0 0.0
    %165 = vmatprep.subr.mxu0 0.0
    %166 = vmatpush1.xpose.msra.mxu0 0.0
    %167 = vmatprep.subr.mxu0 0.0
    %168 = vmatpush1.xpose.msra.mxu0 0.0
    %169 = vmatprep.subr.mxu0 0.0
    %170 = vmatpush1.xpose.msra.mxu0 0.0
    %171 = vmatprep.subr.mxu0 0.0
    %172 = vmatpush1.xpose.msra.mxu0 0.0
    %173 = vmatprep.subr.mxu0 0.0
    %174 = vmatpush1.xpose.msra.mxu0 0.0
    %175 = vmatprep.subr.mxu0 0.0
    %176 = vmatpush1.xpose.msra.mxu0 0.0
    %177 = vmatprep.subr.mxu0 0.0
    %178 = vmatpush1.xpose.msra.mxu0 0.0
    %179 = vmatprep.subr.mxu0 0.0
    %180 = vmatpush1.xpose.msra.mxu0 0.0
    %181 = vmatprep.subr.mxu0 0.0
    %182 = vmatpush1.xpose.msra.mxu0 0.0
    %183 = vmatprep.subr.mxu0 0.0
    %184 = vmatpush1.xpose.msra.mxu0 0.0
    %185 = vmatprep.subr.mxu0 0.0
    %186 = vmatpush1.xpose.msra.mxu0 0.0
    %187 = vmatprep.subr.mxu0 0.0
    %188 = vmatpush1.xpose.msra.mxu0 0.0
    %189 = vmatprep.subr.mxu0 0.0
    %190 = vmatpush1.xpose.msra.mxu0 0.0
    %191 = vmatprep.subr.mxu0 0.0
    %192 = vmatpush1.xpose.msra.mxu0 0.0
    %193 = vmatprep.subr.mxu0 0.0
    %194 = vmatpush1.xpose.msra.mxu0 0.0
    %195 = vmatprep.subr.mxu0 0.0
    %196 = vmatpush1.xpose.msra.mxu0 0.0
    %197 = vmatprep.mubr.f32.mxu0 0.0
    %198 = vmatmul.mubr.f32.gmra.mrb[0].mxu0 %v128
    %v199 = vpop.f32.mrb[0].mxu0
    %v200 = vadd.f32 0.0, %v199
    %v201 = vpop.f32.mrb[0].mxu0
    %202 = vdwg.mxu0
    %v204 = vsel %vm126, %v122, 0
    %206 = vmatprep.subr.mxu0 0.0
    %207 = vmatpush1.xpose.msra.mxu0 %v204
    %208 = vmatprep.subr.mxu0 0.0
    %209 = vmatpush1.xpose.msra.mxu0 0.0
    %210 = vmatprep.subr.mxu0 0.0
    %211 = vmatpush1.xpose.msra.mxu0 0.0
    %212 = vmatprep.subr.mxu0 0.0
    %213 = vmatpush1.xpose.msra.mxu0 0.0
    %214 = vmatprep.subr.mxu0 0.0
    %215 = vmatpush1.xpose.msra.mxu0 0.0
    %216 = vmatprep.subr.mxu0 0.0
    %217 = vmatpush1.xpose.msra.mxu0 0.0
    %218 = vmatprep.subr.mxu0 0.0
    %219 = vmatpush1.xpose.msra.mxu0 0.0
    %220 = vmatprep.subr.mxu0 0.0
    %221 = vmatpush1.xpose.msra.mxu0 0.0
    %222 = vmatprep.subr.mxu0 0.0
    %223 = vmatpush1.xpose.msra.mxu0 0.0
    %224 = vmatprep.subr.mxu0 0.0
    %225 = vmatpush1.xpose.msra.mxu0 0.0
    %226 = vmatprep.subr.mxu0 0.0
    %227 = vmatpush1.xpose.msra.mxu0 0.0
    %228 = vmatprep.subr.mxu0 0.0
    %229 = vmatpush1.xpose.msra.mxu0 0.0
    %230 = vmatprep.subr.mxu0 0.0
    %231 = vmatpush1.xpose.msra.mxu0 0.0
    %232 = vmatprep.subr.mxu0 0.0
    %233 = vmatpush1.xpose.msra.mxu0 0.0
    %234 = vmatprep.subr.mxu0 0.0
    %235 = vmatpush1.xpose.msra.mxu0 0.0
    %236 = vmatprep.subr.mxu0 0.0
    %237 = vmatpush1.xpose.msra.mxu0 0.0
    %238 = vmatprep.subr.mxu0 0.0
    %239 = vmatpush1.xpose.msra.mxu0 0.0
    %240 = vmatprep.subr.mxu0 0.0
    %241 = vmatpush1.xpose.msra.mxu0 0.0
    %242 = vmatprep.subr.mxu0 0.0
    %243 = vmatpush1.xpose.msra.mxu0 0.0
    %244 = vmatprep.subr.mxu0 0.0
    %245 = vmatpush1.xpose.msra.mxu0 0.0
    %246 = vmatprep.subr.mxu0 0.0
    %247 = vmatpush1.xpose.msra.mxu0 0.0
    %248 = vmatprep.subr.mxu0 0.0
    %249 = vmatpush1.xpose.msra.mxu0 0.0
    %250 = vmatprep.subr.mxu0 0.0
    %251 = vmatpush1.xpose.msra.mxu0 0.0
    %252 = vmatprep.subr.mxu0 0.0
    %253 = vmatpush1.xpose.msra.mxu0 0.0
    %254 = vmatprep.subr.mxu0 0.0
    %255 = vmatpush1.xpose.msra.mxu0 0.0
    %256 = vmatprep.subr.mxu0 0.0
    %257 = vmatpush1.xpose.msra.mxu0 0.0
    %258 = vmatprep.subr.mxu0 0.0
    %259 = vmatpush1.xpose.msra.mxu0 0.0
    %260 = vmatprep.subr.mxu0 0.0
    %261 = vmatpush1.xpose.msra.mxu0 0.0
    %262 = vmatprep.subr.mxu0 0.0
    %263 = vmatpush1.xpose.msra.mxu0 0.0
    %264 = vmatprep.subr.mxu0 0.0
    %265 = vmatpush1.xpose.msra.mxu0 0.0
    %266 = vmatprep.subr.mxu0 0.0
    %267 = vmatpush1.xpose.msra.mxu0 0.0
    %268 = vmatprep.subr.mxu0 0.0
    %269 = vmatpush1.xpose.msra.mxu0 0.0
    %270 = vmatprep.mubr.f32.mxu0 0.0
    %271 = vmatmul.mubr.f32.gmra.mrb[0].mxu0 %v128
    %v272 = vpop.f32.mrb[0].mxu0
    %v273 = vadd.f32 0.0, %v272
    %v274 = vpop.f32.mrb[0].mxu0
    %275 = vdwg.mxu0
    %v277 = vsel %vm126, %v123, 0
    %279 = vmatprep.subr.mxu0 0.0
    %280 = vmatpush1.xpose.msra.mxu0 %v277
    %281 = vmatprep.subr.mxu0 0.0
    %282 = vmatpush1.xpose.msra.mxu0 0.0
    %283 = vmatprep.subr.mxu0 0.0
    %284 = vmatpush1.xpose.msra.mxu0 0.0
    %285 = vmatprep.subr.mxu0 0.0
    %286 = vmatpush1.xpose.msra.mxu0 0.0
    %287 = vmatprep.subr.mxu0 0.0
    %288 = vmatpush1.xpose.msra.mxu0 0.0
    %289 = vmatprep.subr.mxu0 0.0
    %290 = vmatpush1.xpose.msra.mxu0 0.0
    %291 = vmatprep.subr.mxu0 0.0
    %292 = vmatpush1.xpose.msra.mxu0 0.0
    %293 = vmatprep.subr.mxu0 0.0
    %294 = vmatpush1.xpose.msra.mxu0 0.0
    %295 = vmatprep.subr.mxu0 0.0
    %296 = vmatpush1.xpose.msra.mxu0 0.0
    %297 = vmatprep.subr.mxu0 0.0
    %298 = vmatpush1.xpose.msra.mxu0 0.0
    %299 = vmatprep.subr.mxu0 0.0
    %300 = vmatpush1.xpose.msra.mxu0 0.0
    %301 = vmatprep.subr.mxu0 0.0
    %302 = vmatpush1.xpose.msra.mxu0 0.0
    %303 = vmatprep.subr.mxu0 0.0
    %304 = vmatpush1.xpose.msra.mxu0 0.0
    %305 = vmatprep.subr.mxu0 0.0
    %306 = vmatpush1.xpose.msra.mxu0 0.0
    %307 = vmatprep.subr.mxu0 0.0
    %308 = vmatpush1.xpose.msra.mxu0 0.0
    %309 = vmatprep.subr.mxu0 0.0
    %310 = vmatpush1.xpose.msra.mxu0 0.0
    %311 = vmatprep.subr.mxu0 0.0
    %312 = vmatpush1.xpose.msra.mxu0 0.0
    %313 = vmatprep.subr.mxu0 0.0
    %314 = vmatpush1.xpose.msra.mxu0 0.0
    %315 = vmatprep.subr.mxu0 0.0
    %316 = vmatpush1.xpose.msra.mxu0 0.0
    %317 = vmatprep.subr.mxu0 0.0
    %318 = vmatpush1.xpose.msra.mxu0 0.0
    %319 = vmatprep.subr.mxu0 0.0
    %320 = vmatpush1.xpose.msra.mxu0 0.0
    %321 = vmatprep.subr.mxu0 0.0
    %322 = vmatpush1.xpose.msra.mxu0 0.0
    %323 = vmatprep.subr.mxu0 0.0
    %324 = vmatpush1.xpose.msra.mxu0 0.0
    %325 = vmatprep.subr.mxu0 0.0
    %326 = vmatpush1.xpose.msra.mxu0 0.0
    %327 = vmatprep.subr.mxu0 0.0
    %328 = vmatpush1.xpose.msra.mxu0 0.0
    %329 = vmatprep.subr.mxu0 0.0
    %330 = vmatpush1.xpose.msra.mxu0 0.0
    %331 = vmatprep.subr.mxu0 0.0
    %332 = vmatpush1.xpose.msra.mxu0 0.0
    %333 = vmatprep.subr.mxu0 0.0
    %334 = vmatpush1.xpose.msra.mxu0 0.0
    %335 = vmatprep.subr.mxu0 0.0
    %336 = vmatpush1.xpose.msra.mxu0 0.0
    %337 = vmatprep.subr.mxu0 0.0
    %338 = vmatpush1.xpose.msra.mxu0 0.0
    %339 = vmatprep.subr.mxu0 0.0
    %340 = vmatpush1.xpose.msra.mxu0 0.0
    %341 = vmatprep.subr.mxu0 0.0
    %342 = vmatpush1.xpose.msra.mxu0 0.0
    %343 = vmatprep.mubr.f32.mxu0 0.0
    %344 = vmatmul.mubr.f32.gmra.mrb[0].mxu0 %v128
    %v345 = vpop.f32.mrb[0].mxu0
    %v346 = vadd.f32 0.0, %v345
    %v347 = vpop.f32.mrb[0].mxu0
    %348 = vdwg.mxu0
    %v350 = vsel %vm126, %v124, 0
    %352 = vmatprep.subr.mxu0 0.0
    %353 = vmatpush1.xpose.msra.mxu0 %v350
    %354 = vmatprep.subr.mxu0 0.0
    %355 = vmatpush1.xpose.msra.mxu0 0.0
    %356 = vmatprep.subr.mxu0 0.0
    %357 = vmatpush1.xpose.msra.mxu0 0.0
    %358 = vmatprep.subr.mxu0 0.0
    %359 = vmatpush1.xpose.msra.mxu0 0.0
    %360 = vmatprep.subr.mxu0 0.0
    %361 = vmatpush1.xpose.msra.mxu0 0.0
    %362 = vmatprep.subr.mxu0 0.0
    %363 = vmatpush1.xpose.msra.mxu0 0.0
    %364 = vmatprep.subr.mxu0 0.0
    %365 = vmatpush1.xpose.msra.mxu0 0.0
    %366 = vmatprep.subr.mxu0 0.0
    %367 = vmatpush1.xpose.msra.mxu0 0.0
    %368 = vmatprep.subr.mxu0 0.0
    %369 = vmatpush1.xpose.msra.mxu0 0.0
    %370 = vmatprep.subr.mxu0 0.0
    %371 = vmatpush1.xpose.msra.mxu0 0.0
    %372 = vmatprep.subr.mxu0 0.0
    %373 = vmatpush1.xpose.msra.mxu0 0.0
    %374 = vmatprep.subr.mxu0 0.0
    %375 = vmatpush1.xpose.msra.mxu0 0.0
    %376 = vmatprep.subr.mxu0 0.0
    %377 = vmatpush1.xpose.msra.mxu0 0.0
    %378 = vmatprep.subr.mxu0 0.0
    %379 = vmatpush1.xpose.msra.mxu0 0.0
    %380 = vmatprep.subr.mxu0 0.0
    %381 = vmatpush1.xpose.msra.mxu0 0.0
    %382 = vmatprep.subr.mxu0 0.0
    %383 = vmatpush1.xpose.msra.mxu0 0.0
    %384 = vmatprep.subr.mxu0 0.0
    %385 = vmatpush1.xpose.msra.mxu0 0.0
    %386 = vmatprep.subr.mxu0 0.0
    %387 = vmatpush1.xpose.msra.mxu0 0.0
    %388 = vmatprep.subr.mxu0 0.0
    %389 = vmatpush1.xpose.msra.mxu0 0.0
    %390 = vmatprep.subr.mxu0 0.0
    %391 = vmatpush1.xpose.msra.mxu0 0.0
    %392 = vmatprep.subr.mxu0 0.0
    %393 = vmatpush1.xpose.msra.mxu0 0.0
    %394 = vmatprep.subr.mxu0 0.0
    %395 = vmatpush1.xpose.msra.mxu0 0.0
    %396 = vmatprep.subr.mxu0 0.0
    %397 = vmatpush1.xpose.msra.mxu0 0.0
    %398 = vmatprep.subr.mxu0 0.0
    %399 = vmatpush1.xpose.msra.mxu0 0.0
    %400 = vmatprep.subr.mxu0 0.0
    %401 = vmatpush1.xpose.msra.mxu0 0.0
    %402 = vmatprep.subr.mxu0 0.0
    %403 = vmatpush1.xpose.msra.mxu0 0.0
    %404 = vmatprep.subr.mxu0 0.0
    %405 = vmatpush1.xpose.msra.mxu0 0.0
    %406 = vmatprep.subr.mxu0 0.0
    %407 = vmatpush1.xpose.msra.mxu0 0.0
    %408 = vmatprep.subr.mxu0 0.0
    %409 = vmatpush1.xpose.msra.mxu0 0.0
    %410 = vmatprep.subr.mxu0 0.0
    %411 = vmatpush1.xpose.msra.mxu0 0.0
    %412 = vmatprep.subr.mxu0 0.0
    %413 = vmatpush1.xpose.msra.mxu0 0.0
    %414 = vmatprep.subr.mxu0 0.0
    %415 = vmatpush1.xpose.msra.mxu0 0.0
    %416 = vmatprep.mubr.f32.mxu0 0.0
    %417 = vmatmul.mubr.f32.gmra.mrb[0].mxu0 %v128
    %v418 = vpop.f32.mrb[0].mxu0
    %v419 = vadd.f32 0.0, %v418
    %v420 = vpop.f32.mrb[0].mxu0
    %421 = vdwg.mxu0
    %vm422 = vcmask 60416
    %v423 = vsel %vm422, %v200, -inf
    %424 = vmax.xlane.f32.xlu0 %v423
    %v425 = vpop.xlane.xlu0 %424
    %v426 = vsel %vm422, %v273, -inf
    %427 = vmax.xlane.f32.xlu0 %v426
    %v428 = vpop.xlane.xlu0 %427
    %v429 = vsel %vm422, %v346, -inf
    %430 = vmax.xlane.f32.xlu0 %v429
    %v431 = vpop.xlane.xlu0 %430
    %v432 = vsel %vm422, %v419, -inf
    %433 = vmax.xlane.f32.xlu0 %v432
    %v434 = vpop.xlane.xlu0 %433
    %v435 = vsub.f32 %v200, %v425
    %v436 = vsub.f32 %v273, %v428
    %v437 = vsub.f32 %v346, %v431
    %v438 = vsub.f32 %v419, %v434
    %v439 = vmul.f32 %v435, 1.442695
    %v440 = vpow.pop %v439
    %v441 = vmul.f32 %v436, 1.442695
    %v442 = vpow.pop %v441
    %v443 = vmul.f32 %v437, 1.442695
    %v444 = vpow.pop %v443
    %v445 = vmul.f32 %v438, 1.442695
    %v446 = vpow.pop %v445
    %v447 = vsel %vm422, %v440, 0.0
    %448 = vadd.xlane.f32.xlu0 %v447
    %v449 = vpop.xlane.xlu0 %448
    %v450 = vsel %vm422, %v442, 0.0
    %451 = vadd.xlane.f32.xlu0 %v450
    %v452 = vpop.xlane.xlu0 %451
    %v453 = vsel %vm422, %v444, 0.0
    %454 = vadd.xlane.f32.xlu0 %v453
    %v455 = vpop.xlane.xlu0 %454
    %v456 = vsel %vm422, %v446, 0.0
    %457 = vadd.xlane.f32.xlu0 %v456
    %v458 = vpop.xlane.xlu0 %457
    %v459 = vrcp.pop %v449
    %v460 = vrcp.pop %v452
    %v461 = vrcp.pop %v455
    %v462 = vrcp.pop %v458
    %v463 = vmul.f32 %v440, %v459
    %v465 = vunpack.c.l.s4 1983009808
    %v466 = vunpack.c.0.s8 %v465
    %v467 = vlaneseq
    %v468 = vshrl.u32 %v467, 7
    %v469 = vsub.s32 %v466, %v468
    %v470 = vrot.slane %v463, %v469
    %v471 = vcombine.high %v470, 0.0
    %v473 = vunpack.c.l.s4 1934713408
    %v474 = vunpack.c.0.s8 %v473
    %v475 = vlaneseq
    %v476 = vshrl.u32 %v475, 7
    %v477 = vsub.s32 %v474, %v476
    %v478 = vrot.slane %v470, %v477
    %v480 = vunpack.c.l.s4 1934713408
    %v481 = vunpack.c.0.s8 %v480
    %v482 = vlaneseq
    %v483 = vshrl.u32 %v482, 7
    %v484 = vsub.s32 %v481, %v483
    %v485 = vrot.slane %v471, %v484
    %v486 = vcombine.high %v478, 0.0
    %v487 = vcombine.high %v485, 0.0
    %v488 = vmul.f32 %v442, %v460
    %v490 = vunpack.c.l.s4 1983009808
    %v491 = vunpack.c.0.s8 %v490
    %v492 = vlaneseq
    %v493 = vshrl.u32 %v492, 7
    %v494 = vsub.s32 %v491, %v493
    %v495 = vrot.slane %v488, %v494
    %v496 = vcombine.high %v495, 0.0
    %v498 = vunpack.c.l.s4 1934713408
    %v499 = vunpack.c.0.s8 %v498
    %v500 = vlaneseq
    %v501 = vshrl.u32 %v500, 7
    %v502 = vsub.s32 %v499, %v501
    %v503 = vrot.slane %v495, %v502
    %v505 = vunpack.c.l.s4 1934713408
    %v506 = vunpack.c.0.s8 %v505
    %v507 = vlaneseq
    %v508 = vshrl.u32 %v507, 7
    %v509 = vsub.s32 %v506, %v508
    %v510 = vrot.slane %v496, %v509
    %v511 = vcombine.high %v503, 0.0
    %v512 = vcombine.high %v510, 0.0
    %v513 = vmul.f32 %v444, %v461
    %v515 = vunpack.c.l.s4 1983009808
    %v516 = vunpack.c.0.s8 %v515
    %v517 = vlaneseq
    %v518 = vshrl.u32 %v517, 7
    %v519 = vsub.s32 %v516, %v518
    %v520 = vrot.slane %v513, %v519
    %v521 = vcombine.high %v520, 0.0
    %v523 = vunpack.c.l.s4 1934713408
    %v524 = vunpack.c.0.s8 %v523
    %v525 = vlaneseq
    %v526 = vshrl.u32 %v525, 7
    %v527 = vsub.s32 %v524, %v526
    %v528 = vrot.slane %v520, %v527
    %v530 = vunpack.c.l.s4 1934713408
    %v531 = vunpack.c.0.s8 %v530
    %v532 = vlaneseq
    %v533 = vshrl.u32 %v532, 7
    %v534 = vsub.s32 %v531, %v533
    %v535 = vrot.slane %v521, %v534
    %v536 = vcombine.high %v528, 0.0
    %v537 = vcombine.high %v535, 0.0
    %v538 = vmul.f32 %v446, %v462
    %v540 = vunpack.c.l.s4 1983009808
    %v541 = vunpack.c.0.s8 %v540
    %v542 = vlaneseq
    %v543 = vshrl.u32 %v542, 7
    %v544 = vsub.s32 %v541, %v543
    %v545 = vrot.slane %v538, %v544
    %v546 = vcombine.high %v545, 0.0
    %v548 = vunpack.c.l.s4 1934713408
    %v549 = vunpack.c.0.s8 %v548
    %v550 = vlaneseq
    %v551 = vshrl.u32 %v550, 7
    %v552 = vsub.s32 %v549, %v551
    %v553 = vrot.slane %v545, %v552
    %v555 = vunpack.c.l.s4 1934713408
    %v556 = vunpack.c.0.s8 %v555
    %v557 = vlaneseq
    %v558 = vshrl.u32 %v557, 7
    %v559 = vsub.s32 %v556, %v558
    %v560 = vrot.slane %v546, %v559
    %v561 = vcombine.high %v553, 0.0
    %v562 = vcombine.high %v560, 0.0
    %567 = vrot.lane.b32.xlu0 %v486, 8
    %v568 = vpop.permute.xlu0 %567
    %569 = vrot.lane.b32.xlu0 %v511, 8
    %v570 = vpop.permute.xlu0 %569
    %571 = vrot.lane.b32.xlu0 %v536, 8
    %v572 = vpop.permute.xlu0 %571
    %573 = vrot.lane.b32.xlu0 %v561, 8
    %v574 = vpop.permute.xlu0 %573
    %583 = vrot.lane.b32.xlu0 %v485, 16
    %v584 = vpop.permute.xlu0 %583
    %585 = vrot.lane.b32.xlu0 %v510, 16
    %v586 = vpop.permute.xlu0 %585
    %587 = vrot.lane.b32.xlu0 %v535, 16
    %v588 = vpop.permute.xlu0 %587
    %589 = vrot.lane.b32.xlu0 %v560, 16
    %v590 = vpop.permute.xlu0 %589
    %599 = vrot.lane.b32.xlu0 %v487, 24
    %v600 = vpop.permute.xlu0 %599
    %601 = vrot.lane.b32.xlu0 %v512, 24
    %v602 = vpop.permute.xlu0 %601
    %603 = vrot.lane.b32.xlu0 %v537, 24
    %v604 = vpop.permute.xlu0 %603
    %605 = vrot.lane.b32.xlu0 %v562, 24
    %v606 = vpop.permute.xlu0 %605
    %vm611 = vcmask 64512
    %v612 = vsel %vm611, %v478, %v568
    %v613 = vsel %vm611, %v503, %v570
    %v614 = vsel %vm611, %v528, %v572
    %v615 = vsel %vm611, %v553, %v574
    %v616 = vsel %vm126, %v612, %v584
    %v617 = vsel %vm126, %v613, %v586
    %v618 = vsel %vm126, %v614, %v588
    %v619 = vsel %vm126, %v615, %v590
    %vm620 = vcmask 195584
    %v621 = vsel %vm620, %v616, %v600
    %v622 = vsel %vm620, %v617, %v602
    %v623 = vsel %vm620, %v618, %v604
    %v624 = vsel %vm620, %v619, %v606
    %vm625 = vcmask 253952
    %626 = vst.msk [vmem:[#allocation2] sm:$0x1] %vm625, %v621
    %627 = vst.msk [vmem:[#allocation2 + $0x1] sm:$0x1] %vm625, %v622
    %628 = vst.msk [vmem:[#allocation2 + $0x2] sm:$0x1] %vm625, %v623
    %629 = vst.msk [vmem:[#allocation2 + $0x3] sm:$0x1] %vm625, %v624
    // Predicated region
    $region14: #{tpu_custom_call.1} parent=1 // pred_check
      _
    $region15: #{tpu_custom_call.1} parent=1 // pred_check_branch
      %631 = sbr.rel (0) target = $region17
    $region16: #{tpu_custom_call.1} parent=1 // pred_region
      %s633 = ssub.s32 64, 64
      %634 = vsyncadd [#allocation3], %s633
      %s635 = sshll.u32 [#allocation2], 4
      %s636 = int_to_ptr.vmem [resolvable:$true] %s635
      %641 = dma.vmem_to_hbm [thread:$0]  %s636, 64, %s3, [#allocation3], 16, 16, 1
    $region17: #{tpu_custom_call.1} parent=1 // pred_fallthru
      _
    // Predicated region
    $region18: #{tpu_custom_call.1} parent=1 // pred_check
      _
    $region19: #{tpu_custom_call.1} parent=1 // pred_check_branch
      %643 = sbr.rel (0) target = $region21
    $region20: #{tpu_custom_call.1} parent=1 // pred_region
      %644 = dma.done [#allocation3], 64
    $region21: #{tpu_custom_call.1} parent=1 // pred_fallthru
      _
    %645 = vsyncpa [#allocation3], 1

</llo_original>
